<compile_context>
chip_gen: v6e
topology: v6e:2x2x1
jax: 0.10.0
libtpu: 0.0.40
codegen_flags: <defaults>
</compile_context>

<pallas_src>
import functools

import jax
import jax.numpy as jnp
from jax.experimental import pallas as pl
from jax.experimental.pallas import tpu as pltpu


def _round_up(n, mult):
    return ((n + mult - 1) // mult) * mult


def _make_spectral_mix_kernel(batch, cin, cout, has_bias):
    """Builds the Pallas kernel body for one mode (M) tile.

    Refs (float32, lane axis = spectral modes):
      x_ref : (2, batch*cin,  TM)   [0]=real, [1]=imag
      w_ref : (2, cin*cout,   TM)
      b_ref : (2, cout,       TM)   (only when has_bias)
      o_ref : (2, batch*cout, TM)

    out[b*cout+o, m] = sum_i x[b*cin+i, m] * w[i*cout+o, m]  (complex) + bias[o, m]
    """

    def kernel(x_ref, w_ref, *rest):
        if has_bias:
            b_ref, o_ref = rest
        else:
            (o_ref,) = rest

        xr = x_ref[0]          # (batch*cin, TM)
        xi = x_ref[1]
        wr = w_ref[0]          # (cin*cout, TM)
        wi = w_ref[1]
        tm = xr.shape[-1]

        if has_bias:
            br = b_ref[0]      # (cout, TM)  -- loaded once, reused for every batch
            bi = b_ref[1]
        else:
            br = jnp.zeros((cout, tm), jnp.float32)
            bi = jnp.zeros((cout, tm), jnp.float32)

        # batch & cin are small static ints -> fully unrolled straight-line VPU code.
        for b in range(batch):
            acc_r = br
            acc_i = bi
            for i in range(cin):
                xr_bi = xr[b * cin + i][None, :]          # (1, TM), bcast over cout rows
                xi_bi = xi[b * cin + i][None, :]
                wr_i = wr[i * cout:(i + 1) * cout]        # (cout, TM)
                wi_i = wi[i * cout:(i + 1) * cout]
                acc_r = acc_r + xr_bi * wr_i - xi_bi * wi_i
                acc_i = acc_i + xr_bi * wi_i + xi_bi * wr_i
            o_ref[0, b * cout:(b + 1) * cout, :] = acc_r
            o_ref[1, b * cout:(b + 1) * cout, :] = acc_i

    return kernel


def _spectral_mix_pallas(x_pk, w_pk, b_pk, *, batch, cin, cout):
    """x_pk: (2, B*Cin, Mp), w_pk: (2, Cin*Cout, Mp), b_pk: (2, Cout, Mp) or None."""
    has_bias = b_pk is not None
    mp = x_pk.shape[-1]                      # multiple of 128 (padded by caller)

    # Largest lane tile (<= 512) that divides Mp: every block is lane-dense,
    # and the grid over M gives Pallas DMA/compute double-buffering.
    if mp <= 512:
        tm = mp
    else:
        tm = 128
        for cand in (512, 384, 256):
            if mp % cand == 0:
                tm = cand
                break
    grid = (mp // tm,)

    def spec3(rows):
        return pl.BlockSpec((2, rows, tm), lambda m: (0, 0, m))

    in_specs = [spec3(batch * cin), spec3(cin * cout)]
    operands = [x_pk, w_pk]
    if has_bias:
        in_specs.append(spec3(cout))
        operands.append(b_pk)

    kernel = _make_spectral_mix_kernel(batch, cin, cout, has_bias)
    return pl.pallas_call(
        kernel,
        grid=grid,
        in_specs=in_specs,
        out_specs=spec3(batch * cout),
        out_shape=jax.ShapeDtypeStruct((2, batch * cout, mp), jnp.float32),
        compiler_params=pltpu.CompilerParams(
            # M tiles are independent -> megacore sharding on v7x, no-op on v5e/v6e.
            dimension_semantics=("parallel",),
            vmem_limit_bytes=64 * 1024 * 1024,
        ),
    )(*operands)


@functools.partial(jax.jit, static_argnames=("modes", "bias", "periodic"))
def fourier_conv1d(x, w_r, w_i, b_r, b_i, *, modes, bias=True, periodic=False):
    """Forward pass equivalent of FourierConv1d.forward; x is (B, C_in, N)."""
    B, Cin, _ = x.shape
    Cout = w_r.shape[1]

    if not periodic:
        # F.pad(x, [0, modes]): pad last dim on the right by `modes`.
        x = jnp.pad(x, ((0, 0), (0, 0), (0, modes)))
    L = x.shape[-1]

    x_ft = jnp.fft.rfft(x)                       # (B, Cin, L//2+1) complex64
    x_low = x_ft[:, :, :modes]

    # Lane-dense mode axis: pad M up to a multiple of 128.
    mp = _round_up(modes, 128)
    pad_m = mp - modes

    def pack2(re, im):
        re = jnp.pad(re.astype(jnp.float32), ((0, 0), (0, pad_m)))
        im = jnp.pad(im.astype(jnp.float32), ((0, 0), (0, pad_m)))
        return jnp.stack([re, im])               # (2, rows, Mp)

    x_pk = pack2(jnp.real(x_low).reshape(B * Cin, modes),
                 jnp.imag(x_low).reshape(B * Cin, modes))
    w_pk = pack2(w_r.reshape(Cin * Cout, modes), w_i.reshape(Cin * Cout, modes))
    b_pk = (pack2(b_r.reshape(Cout, modes), b_i.reshape(Cout, modes))
            if bias else None)

    out_pk = _spectral_mix_pallas(x_pk, w_pk, b_pk, batch=B, cin=Cin, cout=Cout)

    out_r = out_pk[0, :, :modes].reshape(B, Cout, modes)
    out_i = out_pk[1, :, :modes].reshape(B, Cout, modes)
    out_low = (out_r + 1j * out_i).astype(jnp.complex64)

    # Only the first `modes` positive frequencies are populated, as in the
    # PyTorch layer.  (The torch code writes into zeros_like(x_ft); it assumes
    # Cin == Cout — here out_ft is built with Cout channels.)
    out_ft = jnp.zeros((B, Cout, L // 2 + 1), jnp.complex64)
    out_ft = out_ft.at[:, :, :modes].set(out_low)

    out = jnp.fft.irfft(out_ft, n=L)
    if not periodic:
        out = out[..., :-modes]
    return out


def _reference(x, w_r, w_i, b_r, b_i, *, modes, bias=True, periodic=False):
    """Pure-JAX reference mirroring the PyTorch forward."""
    if not periodic:
        x = jnp.pad(x, ((0, 0), (0, 0), (0, modes)))
    L = x.shape[-1]
    x_ft = jnp.fft.rfft(x)
    w = (w_r + 1j * w_i).astype(jnp.complex64)
    low = jnp.einsum('bix,iox->box', x_ft[:, :, :modes], w)
    if bias:
        low = low + (b_r + 1j * b_i).astype(jnp.complex64)
    out_ft = jnp.zeros((x.shape[0], w.shape[1], L // 2 + 1), jnp.complex64)
    out_ft = out_ft.at[:, :, :modes].set(low)
    out = jnp.fft.irfft(out_ft, n=L)
    if not periodic:
        out = out[..., :-modes]
    return out


if __name__ == "__main__":
    # Small deterministic config: batch=2, in_channels=4, out_channels=4,
    # spatial N=16, modes (size) = 16, bias=True, periodic=False -> x: (2, 4, 16).
    B, Cin, Cout, N, MODES = 2, 4, 4, 16, 16

    key = jax.random.PRNGKey(0)
    kx, kwr, kwi, kbr, kbi = jax.random.split(key, 5)

    x = jax.random.normal(kx, (B, Cin, N), dtype=jnp.float32)

    # Matches the torch init scale: U[0,1)/(Cin*Cout) for weights, /Cout for
    # biases, for both real and imaginary parts.
    w_r = jax.random.uniform(kwr, (Cin, Cout, MODES), jnp.float32) / (Cin * Cout)
    w_i = jax.random.uniform(kwi, (Cin, Cout, MODES), jnp.float32) / (Cin * Cout)
    b_r = jax.random.uniform(kbr, (Cout, MODES), jnp.float32) / Cout
    b_i = jax.random.uniform(kbi, (Cout, MODES), jnp.float32) / Cout

    out = fourier_conv1d(x, w_r, w_i, b_r, b_i,
                         modes=MODES, bias=True, periodic=False)
    out = jax.block_until_ready(out)

    ref = _reference(x, w_r, w_i, b_r, b_i,
                     modes=MODES, bias=True, periodic=False)
    ref = jax.block_until_ready(ref)

    assert out.shape == (B, Cout, N), out.shape
    max_err = float(jnp.max(jnp.abs(out - ref)))
    assert jnp.allclose(out, ref, rtol=1e-4, atol=1e-5), max_err

    print("KERNEL_OK")
</pallas_src>

<mosaic_0001>
module attributes {stable_mosaic.version = 11 : i64} {
  func.func @kernel(%arg0: i32, %arg1: memref<2x8x128xf32, #tpu.memory_space<vmem>>, %arg2: memref<2x16x128xf32, #tpu.memory_space<vmem>>, %arg3: memref<2x4x128xf32, #tpu.memory_space<vmem>>, %arg4: memref<2x8x128xf32, #tpu.memory_space<vmem>>) attributes {dimension_semantics = [#tpu.dimension_semantics<parallel>], iteration_bounds = array<i64: 1>, scalar_prefetch = 0 : i64, scratch_operands = 0 : i64, tpu.core_type = #tpu.core_type<tc>, window_params = [{transform_indices = @transform_0, window_bounds = array<i64: 2, 8, 128>}, {transform_indices = @transform_1, window_bounds = array<i64: 2, 16, 128>}, {transform_indices = @transform_2, window_bounds = array<i64: 2, 4, 128>}, {transform_indices = @transform_3, window_bounds = array<i64: 2, 8, 128>}]} {
    %c0 = arith.constant 0 : index
    %c0_0 = arith.constant 0 : index
    %c0_1 = arith.constant 0 : index
    %0 = vector.load %arg1[%c0, %c0_0, %c0_1] : memref<2x8x128xf32, #tpu.memory_space<vmem>>, vector<1x8x128xf32>
    %1 = vector.shape_cast %0 : vector<1x8x128xf32> to vector<8x128xf32>
    %c1 = arith.constant 1 : index
    %c0_2 = arith.constant 0 : index
    %c0_3 = arith.constant 0 : index
    %2 = vector.load %arg1[%c1, %c0_2, %c0_3] : memref<2x8x128xf32, #tpu.memory_space<vmem>>, vector<1x8x128xf32>
    %3 = vector.shape_cast %2 : vector<1x8x128xf32> to vector<8x128xf32>
    %c0_4 = arith.constant 0 : index
    %c0_5 = arith.constant 0 : index
    %c0_6 = arith.constant 0 : index
    %4 = vector.load %arg2[%c0_4, %c0_5, %c0_6] : memref<2x16x128xf32, #tpu.memory_space<vmem>>, vector<1x16x128xf32>
    %5 = vector.shape_cast %4 : vector<1x16x128xf32> to vector<16x128xf32>
    %c1_7 = arith.constant 1 : index
    %c0_8 = arith.constant 0 : index
    %c0_9 = arith.constant 0 : index
    %6 = vector.load %arg2[%c1_7, %c0_8, %c0_9] : memref<2x16x128xf32, #tpu.memory_space<vmem>>, vector<1x16x128xf32>
    %7 = vector.shape_cast %6 : vector<1x16x128xf32> to vector<16x128xf32>
    %c0_10 = arith.constant 0 : index
    %c0_11 = arith.constant 0 : index
    %c0_12 = arith.constant 0 : index
    %8 = vector.load %arg3[%c0_10, %c0_11, %c0_12] : memref<2x4x128xf32, #tpu.memory_space<vmem>>, vector<1x4x128xf32>
    %9 = vector.shape_cast %8 : vector<1x4x128xf32> to vector<4x128xf32>
    %c1_13 = arith.constant 1 : index
    %c0_14 = arith.constant 0 : index
    %c0_15 = arith.constant 0 : index
    %10 = vector.load %arg3[%c1_13, %c0_14, %c0_15] : memref<2x4x128xf32, #tpu.memory_space<vmem>>, vector<1x4x128xf32>
    %11 = vector.shape_cast %10 : vector<1x4x128xf32> to vector<4x128xf32>
    %12 = vector.extract_strided_slice %1 {offsets = [0, 0], sizes = [1, 128], strides = [1, 1]} : vector<8x128xf32> to vector<1x128xf32>
    %13 = vector.shape_cast %12 : vector<1x128xf32> to vector<128xf32>
    %14 = vector.shape_cast %13 : vector<128xf32> to vector<1x128xf32>
    %15 = vector.extract_strided_slice %3 {offsets = [0, 0], sizes = [1, 128], strides = [1, 1]} : vector<8x128xf32> to vector<1x128xf32>
    %16 = vector.shape_cast %15 : vector<1x128xf32> to vector<128xf32>
    %17 = vector.shape_cast %16 : vector<128xf32> to vector<1x128xf32>
    %18 = vector.extract_strided_slice %5 {offsets = [0, 0], sizes = [4, 128], strides = [1, 1]} : vector<16x128xf32> to vector<4x128xf32>
    %19 = vector.extract_strided_slice %7 {offsets = [0, 0], sizes = [4, 128], strides = [1, 1]} : vector<16x128xf32> to vector<4x128xf32>
    %20 = vector.broadcast %14 : vector<1x128xf32> to vector<4x128xf32>
    %21 = arith.mulf %20, %18 : vector<4x128xf32>
    %22 = arith.addf %9, %21 : vector<4x128xf32>
    %23 = vector.broadcast %17 : vector<1x128xf32> to vector<4x128xf32>
    %24 = arith.mulf %23, %19 : vector<4x128xf32>
    %25 = arith.subf %22, %24 : vector<4x128xf32>
    %26 = vector.broadcast %14 : vector<1x128xf32> to vector<4x128xf32>
    %27 = arith.mulf %26, %19 : vector<4x128xf32>
    %28 = arith.addf %11, %27 : vector<4x128xf32>
    %29 = vector.broadcast %17 : vector<1x128xf32> to vector<4x128xf32>
    %30 = arith.mulf %29, %18 : vector<4x128xf32>
    %31 = arith.addf %28, %30 : vector<4x128xf32>
    %32 = vector.extract_strided_slice %1 {offsets = [1, 0], sizes = [1, 128], strides = [1, 1]} : vector<8x128xf32> to vector<1x128xf32>
    %33 = vector.shape_cast %32 : vector<1x128xf32> to vector<128xf32>
    %34 = vector.shape_cast %33 : vector<128xf32> to vector<1x128xf32>
    %35 = vector.extract_strided_slice %3 {offsets = [1, 0], sizes = [1, 128], strides = [1, 1]} : vector<8x128xf32> to vector<1x128xf32>
    %36 = vector.shape_cast %35 : vector<1x128xf32> to vector<128xf32>
    %37 = vector.shape_cast %36 : vector<128xf32> to vector<1x128xf32>
    %38 = vector.extract_strided_slice %5 {offsets = [4, 0], sizes = [4, 128], strides = [1, 1]} : vector<16x128xf32> to vector<4x128xf32>
    %39 = vector.extract_strided_slice %7 {offsets = [4, 0], sizes = [4, 128], strides = [1, 1]} : vector<16x128xf32> to vector<4x128xf32>
    %40 = vector.broadcast %34 : vector<1x128xf32> to vector<4x128xf32>
    %41 = arith.mulf %40, %38 : vector<4x128xf32>
    %42 = arith.addf %25, %41 : vector<4x128xf32>
    %43 = vector.broadcast %37 : vector<1x128xf32> to vector<4x128xf32>
    %44 = arith.mulf %43, %39 : vector<4x128xf32>
    %45 = arith.subf %42, %44 : vector<4x128xf32>
    %46 = vector.broadcast %34 : vector<1x128xf32> to vector<4x128xf32>
    %47 = arith.mulf %46, %39 : vector<4x128xf32>
    %48 = arith.addf %31, %47 : vector<4x128xf32>
    %49 = vector.broadcast %37 : vector<1x128xf32> to vector<4x128xf32>
    %50 = arith.mulf %49, %38 : vector<4x128xf32>
    %51 = arith.addf %48, %50 : vector<4x128xf32>
    %52 = vector.extract_strided_slice %1 {offsets = [2, 0], sizes = [1, 128], strides = [1, 1]} : vector<8x128xf32> to vector<1x128xf32>
    %53 = vector.shape_cast %52 : vector<1x128xf32> to vector<128xf32>
    %54 = vector.shape_cast %53 : vector<128xf32> to vector<1x128xf32>
    %55 = vector.extract_strided_slice %3 {offsets = [2, 0], sizes = [1, 128], strides = [1, 1]} : vector<8x128xf32> to vector<1x128xf32>
    %56 = vector.shape_cast %55 : vector<1x128xf32> to vector<128xf32>
    %57 = vector.shape_cast %56 : vector<128xf32> to vector<1x128xf32>
    %58 = vector.extract_strided_slice %5 {offsets = [8, 0], sizes = [4, 128], strides = [1, 1]} : vector<16x128xf32> to vector<4x128xf32>
    %59 = vector.extract_strided_slice %7 {offsets = [8, 0], sizes = [4, 128], strides = [1, 1]} : vector<16x128xf32> to vector<4x128xf32>
    %60 = vector.broadcast %54 : vector<1x128xf32> to vector<4x128xf32>
    %61 = arith.mulf %60, %58 : vector<4x128xf32>
    %62 = arith.addf %45, %61 : vector<4x128xf32>
    %63 = vector.broadcast %57 : vector<1x128xf32> to vector<4x128xf32>
    %64 = arith.mulf %63, %59 : vector<4x128xf32>
    %65 = arith.subf %62, %64 : vector<4x128xf32>
    %66 = vector.broadcast %54 : vector<1x128xf32> to vector<4x128xf32>
    %67 = arith.mulf %66, %59 : vector<4x128xf32>
    %68 = arith.addf %51, %67 : vector<4x128xf32>
    %69 = vector.broadcast %57 : vector<1x128xf32> to vector<4x128xf32>
    %70 = arith.mulf %69, %58 : vector<4x128xf32>
    %71 = arith.addf %68, %70 : vector<4x128xf32>
    %72 = vector.extract_strided_slice %1 {offsets = [3, 0], sizes = [1, 128], strides = [1, 1]} : vector<8x128xf32> to vector<1x128xf32>
    %73 = vector.shape_cast %72 : vector<1x128xf32> to vector<128xf32>
    %74 = vector.shape_cast %73 : vector<128xf32> to vector<1x128xf32>
    %75 = vector.extract_strided_slice %3 {offsets = [3, 0], sizes = [1, 128], strides = [1, 1]} : vector<8x128xf32> to vector<1x128xf32>
    %76 = vector.shape_cast %75 : vector<1x128xf32> to vector<128xf32>
    %77 = vector.shape_cast %76 : vector<128xf32> to vector<1x128xf32>
    %78 = vector.extract_strided_slice %5 {offsets = [12, 0], sizes = [4, 128], strides = [1, 1]} : vector<16x128xf32> to vector<4x128xf32>
    %79 = vector.extract_strided_slice %7 {offsets = [12, 0], sizes = [4, 128], strides = [1, 1]} : vector<16x128xf32> to vector<4x128xf32>
    %80 = vector.broadcast %74 : vector<1x128xf32> to vector<4x128xf32>
    %81 = arith.mulf %80, %78 : vector<4x128xf32>
    %82 = arith.addf %65, %81 : vector<4x128xf32>
    %83 = vector.broadcast %77 : vector<1x128xf32> to vector<4x128xf32>
    %84 = arith.mulf %83, %79 : vector<4x128xf32>
    %85 = arith.subf %82, %84 : vector<4x128xf32>
    %86 = vector.broadcast %74 : vector<1x128xf32> to vector<4x128xf32>
    %87 = arith.mulf %86, %79 : vector<4x128xf32>
    %88 = arith.addf %71, %87 : vector<4x128xf32>
    %89 = vector.broadcast %77 : vector<1x128xf32> to vector<4x128xf32>
    %90 = arith.mulf %89, %78 : vector<4x128xf32>
    %91 = arith.addf %88, %90 : vector<4x128xf32>
    %c0_16 = arith.constant 0 : index
    %c0_17 = arith.constant 0 : index
    %c0_18 = arith.constant 0 : index
    %92 = vector.load %arg4[%c0_16, %c0_17, %c0_18] : memref<2x8x128xf32, #tpu.memory_space<vmem>>, vector<1x4x128xf32>
    %93 = vector.shape_cast %92 : vector<1x4x128xf32> to vector<4x128xf32>
    %94 = vector.shape_cast %85 : vector<4x128xf32> to vector<1x4x128xf32>
    tpu.vector_store %arg4[%c0_16, %c0_17, %c0_18], %94 {strides = array<i32>} : memref<2x8x128xf32, #tpu.memory_space<vmem>>, vector<1x4x128xf32>,
    %c1_19 = arith.constant 1 : index
    %c0_20 = arith.constant 0 : index
    %c0_21 = arith.constant 0 : index
    %95 = vector.load %arg4[%c1_19, %c0_20, %c0_21] : memref<2x8x128xf32, #tpu.memory_space<vmem>>, vector<1x4x128xf32>
    %96 = vector.shape_cast %95 : vector<1x4x128xf32> to vector<4x128xf32>
    %97 = vector.shape_cast %91 : vector<4x128xf32> to vector<1x4x128xf32>
    tpu.vector_store %arg4[%c1_19, %c0_20, %c0_21], %97 {strides = array<i32>} : memref<2x8x128xf32, #tpu.memory_space<vmem>>, vector<1x4x128xf32>,
    %98 = vector.extract_strided_slice %1 {offsets = [4, 0], sizes = [1, 128], strides = [1, 1]} : vector<8x128xf32> to vector<1x128xf32>
    %99 = vector.shape_cast %98 : vector<1x128xf32> to vector<128xf32>
    %100 = vector.shape_cast %99 : vector<128xf32> to vector<1x128xf32>
    %101 = vector.extract_strided_slice %3 {offsets = [4, 0], sizes = [1, 128], strides = [1, 1]} : vector<8x128xf32> to vector<1x128xf32>
    %102 = vector.shape_cast %101 : vector<1x128xf32> to vector<128xf32>
    %103 = vector.shape_cast %102 : vector<128xf32> to vector<1x128xf32>
    %104 = vector.extract_strided_slice %5 {offsets = [0, 0], sizes = [4, 128], strides = [1, 1]} : vector<16x128xf32> to vector<4x128xf32>
    %105 = vector.extract_strided_slice %7 {offsets = [0, 0], sizes = [4, 128], strides = [1, 1]} : vector<16x128xf32> to vector<4x128xf32>
    %106 = vector.broadcast %100 : vector<1x128xf32> to vector<4x128xf32>
    %107 = arith.mulf %106, %104 : vector<4x128xf32>
    %108 = arith.addf %9, %107 : vector<4x128xf32>
    %109 = vector.broadcast %103 : vector<1x128xf32> to vector<4x128xf32>
    %110 = arith.mulf %109, %105 : vector<4x128xf32>
    %111 = arith.subf %108, %110 : vector<4x128xf32>
    %112 = vector.broadcast %100 : vector<1x128xf32> to vector<4x128xf32>
    %113 = arith.mulf %112, %105 : vector<4x128xf32>
    %114 = arith.addf %11, %113 : vector<4x128xf32>
    %115 = vector.broadcast %103 : vector<1x128xf32> to vector<4x128xf32>
    %116 = arith.mulf %115, %104 : vector<4x128xf32>
    %117 = arith.addf %114, %116 : vector<4x128xf32>
    %118 = vector.extract_strided_slice %1 {offsets = [5, 0], sizes = [1, 128], strides = [1, 1]} : vector<8x128xf32> to vector<1x128xf32>
    %119 = vector.shape_cast %118 : vector<1x128xf32> to vector<128xf32>
    %120 = vector.shape_cast %119 : vector<128xf32> to vector<1x128xf32>
    %121 = vector.extract_strided_slice %3 {offsets = [5, 0], sizes = [1, 128], strides = [1, 1]} : vector<8x128xf32> to vector<1x128xf32>
    %122 = vector.shape_cast %121 : vector<1x128xf32> to vector<128xf32>
    %123 = vector.shape_cast %122 : vector<128xf32> to vector<1x128xf32>
    %124 = vector.extract_strided_slice %5 {offsets = [4, 0], sizes = [4, 128], strides = [1, 1]} : vector<16x128xf32> to vector<4x128xf32>
    %125 = vector.extract_strided_slice %7 {offsets = [4, 0], sizes = [4, 128], strides = [1, 1]} : vector<16x128xf32> to vector<4x128xf32>
    %126 = vector.broadcast %120 : vector<1x128xf32> to vector<4x128xf32>
    %127 = arith.mulf %126, %124 : vector<4x128xf32>
    %128 = arith.addf %111, %127 : vector<4x128xf32>
    %129 = vector.broadcast %123 : vector<1x128xf32> to vector<4x128xf32>
    %130 = arith.mulf %129, %125 : vector<4x128xf32>
    %131 = arith.subf %128, %130 : vector<4x128xf32>
    %132 = vector.broadcast %120 : vector<1x128xf32> to vector<4x128xf32>
    %133 = arith.mulf %132, %125 : vector<4x128xf32>
    %134 = arith.addf %117, %133 : vector<4x128xf32>
    %135 = vector.broadcast %123 : vector<1x128xf32> to vector<4x128xf32>
    %136 = arith.mulf %135, %124 : vector<4x128xf32>
    %137 = arith.addf %134, %136 : vector<4x128xf32>
    %138 = vector.extract_strided_slice %1 {offsets = [6, 0], sizes = [1, 128], strides = [1, 1]} : vector<8x128xf32> to vector<1x128xf32>
    %139 = vector.shape_cast %138 : vector<1x128xf32> to vector<128xf32>
    %140 = vector.shape_cast %139 : vector<128xf32> to vector<1x128xf32>
    %141 = vector.extract_strided_slice %3 {offsets = [6, 0], sizes = [1, 128], strides = [1, 1]} : vector<8x128xf32> to vector<1x128xf32>
    %142 = vector.shape_cast %141 : vector<1x128xf32> to vector<128xf32>
    %143 = vector.shape_cast %142 : vector<128xf32> to vector<1x128xf32>
    %144 = vector.extract_strided_slice %5 {offsets = [8, 0], sizes = [4, 128], strides = [1, 1]} : vector<16x128xf32> to vector<4x128xf32>
    %145 = vector.extract_strided_slice %7 {offsets = [8, 0], sizes = [4, 128], strides = [1, 1]} : vector<16x128xf32> to vector<4x128xf32>
    %146 = vector.broadcast %140 : vector<1x128xf32> to vector<4x128xf32>
    %147 = arith.mulf %146, %144 : vector<4x128xf32>
    %148 = arith.addf %131, %147 : vector<4x128xf32>
    %149 = vector.broadcast %143 : vector<1x128xf32> to vector<4x128xf32>
    %150 = arith.mulf %149, %145 : vector<4x128xf32>
    %151 = arith.subf %148, %150 : vector<4x128xf32>
    %152 = vector.broadcast %140 : vector<1x128xf32> to vector<4x128xf32>
    %153 = arith.mulf %152, %145 : vector<4x128xf32>
    %154 = arith.addf %137, %153 : vector<4x128xf32>
    %155 = vector.broadcast %143 : vector<1x128xf32> to vector<4x128xf32>
    %156 = arith.mulf %155, %144 : vector<4x128xf32>
    %157 = arith.addf %154, %156 : vector<4x128xf32>
    %158 = vector.extract_strided_slice %1 {offsets = [7, 0], sizes = [1, 128], strides = [1, 1]} : vector<8x128xf32> to vector<1x128xf32>
    %159 = vector.shape_cast %158 : vector<1x128xf32> to vector<128xf32>
    %160 = vector.shape_cast %159 : vector<128xf32> to vector<1x128xf32>
    %161 = vector.extract_strided_slice %3 {offsets = [7, 0], sizes = [1, 128], strides = [1, 1]} : vector<8x128xf32> to vector<1x128xf32>
    %162 = vector.shape_cast %161 : vector<1x128xf32> to vector<128xf32>
    %163 = vector.shape_cast %162 : vector<128xf32> to vector<1x128xf32>
    %164 = vector.extract_strided_slice %5 {offsets = [12, 0], sizes = [4, 128], strides = [1, 1]} : vector<16x128xf32> to vector<4x128xf32>
    %165 = vector.extract_strided_slice %7 {offsets = [12, 0], sizes = [4, 128], strides = [1, 1]} : vector<16x128xf32> to vector<4x128xf32>
    %166 = vector.broadcast %160 : vector<1x128xf32> to vector<4x128xf32>
    %167 = arith.mulf %166, %164 : vector<4x128xf32>
    %168 = arith.addf %151, %167 : vector<4x128xf32>
    %169 = vector.broadcast %163 : vector<1x128xf32> to vector<4x128xf32>
    %170 = arith.mulf %169, %165 : vector<4x128xf32>
    %171 = arith.subf %168, %170 : vector<4x128xf32>
    %172 = vector.broadcast %160 : vector<1x128xf32> to vector<4x128xf32>
    %173 = arith.mulf %172, %165 : vector<4x128xf32>
    %174 = arith.addf %157, %173 : vector<4x128xf32>
    %175 = vector.broadcast %163 : vector<1x128xf32> to vector<4x128xf32>
    %176 = arith.mulf %175, %164 : vector<4x128xf32>
    %177 = arith.addf %174, %176 : vector<4x128xf32>
    %c0_22 = arith.constant 0 : index
    %c4 = arith.constant 4 : index
    %c0_23 = arith.constant 0 : index
    %178 = vector.load %arg4[%c0_22, %c4, %c0_23] : memref<2x8x128xf32, #tpu.memory_space<vmem>>, vector<1x4x128xf32>
    %179 = vector.shape_cast %178 : vector<1x4x128xf32> to vector<4x128xf32>
    %180 = vector.shape_cast %171 : vector<4x128xf32> to vector<1x4x128xf32>
    tpu.vector_store %arg4[%c0_22, %c4, %c0_23], %180 {strides = array<i32>} : memref<2x8x128xf32, #tpu.memory_space<vmem>>, vector<1x4x128xf32>,
    %c1_24 = arith.constant 1 : index
    %c4_25 = arith.constant 4 : index
    %c0_26 = arith.constant 0 : index
    %181 = vector.load %arg4[%c1_24, %c4_25, %c0_26] : memref<2x8x128xf32, #tpu.memory_space<vmem>>, vector<1x4x128xf32>
    %182 = vector.shape_cast %181 : vector<1x4x128xf32> to vector<4x128xf32>
    %183 = vector.shape_cast %177 : vector<4x128xf32> to vector<1x4x128xf32>
    tpu.vector_store %arg4[%c1_24, %c4_25, %c0_26], %183 {strides = array<i32>} : memref<2x8x128xf32, #tpu.memory_space<vmem>>, vector<1x4x128xf32>,
    return
  }
  func.func @transform_0(%arg0: i32) -> (i32, i32, i32) {
    %c0_i32 = arith.constant 0 : i32
    %c0_i32_0 = arith.constant 0 : i32
    %c0_i32_1 = arith.constant 0 : i32
    return %c0_i32, %c0_i32_0, %arg0 : i32, i32, i32
  }
  func.func @transform_1(%arg0: i32) -> (i32, i32, i32) {
    %c0_i32 = arith.constant 0 : i32
    %c0_i32_0 = arith.constant 0 : i32
    %c0_i32_1 = arith.constant 0 : i32
    return %c0_i32, %c0_i32_0, %arg0 : i32, i32, i32
  }
  func.func @transform_2(%arg0: i32) -> (i32, i32, i32) {
    %c0_i32 = arith.constant 0 : i32
    %c0_i32_0 = arith.constant 0 : i32
    %c0_i32_1 = arith.constant 0 : i32
    return %c0_i32, %c0_i32_0, %arg0 : i32, i32, i32
  }
  func.func @transform_3(%arg0: i32) -> (i32, i32, i32) {
    %c0_i32 = arith.constant 0 : i32
    %c0_i32_0 = arith.constant 0 : i32
    %c0_i32_1 = arith.constant 0 : i32
    return %c0_i32, %c0_i32_0, %arg0 : i32, i32, i32
  }
}

</mosaic_0001>

<llo_original>
// kernel: reverse.1
$region0: #{reverse.1}
  %s0 = inlined_call_operand.vmem [shape: f32[2,4,15], index: 0, kind: input, shape index: {}]
  %s1 = inlined_call_operand.vmem [shape: f32[2,4,15], index: 1, kind: output, shape index: {}]
  %v2 = vlaneseq
  %v3 = vsub.s32 14, %v2
  %4 = vset.pattern.permute.xlu0 %v3
  $region1: #{reverse.1} parent=0
    #allocation0 [shape = 'u8[8192]{0}', space=vmem, size = 0x2000, scoped, tag = 'operand span for operand 0']
    #allocation1 [shape = 'u8[4096]{0}', space=vmem, size = 0x1000, scoped, tag = 'packed  for operand 0']
    #allocation2 [shape = 'u8[8192]{0}', space=vmem, size = 0x2000, scoped, tag = 'operand span for operand 1']
    #allocation3 [shape = 'u8[4096]{0}', space=vmem, size = 0x1000, scoped, tag = 'packed  for operand 1']
    // Predicated region
    $region2: #{reverse.1} parent=1 // pred_check
      _
    $region3: #{reverse.1} parent=1 // pred_check_branch
      %6 = sbr.rel (0) target = $region5
    $region4: #{reverse.1} parent=1 // pred_region
      // Predicated region
      $region6: #{reverse.1} parent=4 // pred_check
        _
      $region7: #{reverse.1} parent=4 // pred_check_branch
        %8 = sbr.rel target = $region9
      $region8: #{reverse.1} parent=4 // pred_region
        // Predicated region
        $region21: #{reverse.1} parent=8 // pred_check
          _
        $region22: #{reverse.1} parent=8 // pred_check_branch
          %26 = sbr.rel (0) target = $region24
        $region23: #{reverse.1} parent=8 // pred_region
          loop: start=0, step=1, limit=1
          $region25: #{reverse.1} parent=23 // loop_pre_header
            _
          $region26: #{reverse.1} parent=23 // loop_header
            %s28 = sphi 0, %s32
            %p29 = scmp.ge.s32.totalorder %s28, 1
            %s33 = sphi %s0, %s0
            %s34 = sphi [#allocation1], [#allocation1]
          $region27: #{reverse.1} parent=23 // loop_header_branch
            %31 = sbr.rel (%p29) target = $region31
          $region28: #{reverse.1} parent=23 // loop_body
            _
          $region29: #{reverse.1} parent=23 // loop_footer
            %s32 = sadd.s32 1, %s28
          $region30: #{reverse.1} parent=23 // loop_footer_branch
            %27 = sbr.rel target = $region26
          $region31: #{reverse.1} parent=23 // loop_exit
            _
          %s36 = ssub.s32 16, 1
          loop: start=0, step=1, limit=1
          $region32: #{reverse.1} parent=23 // loop_pre_header
            _
          $region33: #{reverse.1} parent=23 // loop_header
            %s38 = sphi 0, %s42
            %p39 = scmp.ge.s32.totalorder %s38, 1
            %s43 = sphi %s0, %s0
            %s44 = sphi [#allocation1], [#allocation1]
          $region34: #{reverse.1} parent=23 // loop_header_branch
            %41 = sbr.rel (%p39) target = $region38
          $region35: #{reverse.1} parent=23 // loop_body
            %v45 = vld [vmem:[%s43] sm:%s36]
            %46 = vst [vmem:[%s44] sm:%s36] %v45
            %v47 = vld [vmem:[%s43 + $0x4] sm:%s36]
            %48 = vst [vmem:[%s44 + $0x4] sm:%s36] %v47
          $region36: #{reverse.1} parent=23 // loop_footer
            %s42 = sadd.s32 1, %s38
          $region37: #{reverse.1} parent=23 // loop_footer_branch
            %37 = sbr.rel target = $region33
          $region38: #{reverse.1} parent=23 // loop_exit
            _
        $region24: #{reverse.1} parent=8 // pred_fallthru
          _
      $region9: #{reverse.1} parent=4 // pred_fallthru
        _
      // Predicated region
      $region10: #{reverse.1} parent=4 // pred_check
        _
      $region11: #{reverse.1} parent=4 // pred_check_branch
        %10 = sbr.rel (0) target = $region13
      $region12: #{reverse.1} parent=4 // pred_region
        %s12 = ssub.s32 16, 1
        loop: start=0, step=1, limit=1
        $region14: #{reverse.1} parent=12 // loop_pre_header
          _
        $region15: #{reverse.1} parent=12 // loop_header
          %s14 = sphi 0, %s18
          %p15 = scmp.ge.s32.totalorder %s14, 1
          %s19 = sphi %s0, %s0
          %s20 = sphi [#allocation1], [#allocation1]
        $region16: #{reverse.1} parent=12 // loop_header_branch
          %17 = sbr.rel (%p15) target = $region20
        $region17: #{reverse.1} parent=12 // loop_body
          %v21 = vld [vmem:[%s19] sm:%s12]
          %22 = vst [vmem:[%s20] sm:%s12] %v21
          %v23 = vld [vmem:[%s19 + $0x4] sm:%s12]
          %24 = vst [vmem:[%s20 + $0x4] sm:%s12] %v23
        $region18: #{reverse.1} parent=12 // loop_footer
          %s18 = sadd.s32 1, %s14
        $region19: #{reverse.1} parent=12 // loop_footer_branch
          %13 = sbr.rel target = $region15
        $region20: #{reverse.1} parent=12 // loop_exit
          _
      $region13: #{reverse.1} parent=4 // pred_fallthru
        _
    $region5: #{reverse.1} parent=1 // pred_fallthru
      _
    %49 = vnop
    %s51 = sshll.u32 1, 4
    %s52 = ssub.s32 %s51, 1
    %s53 = scalar_lea.vmem [#allocation1], 4
    %v54 = vld [vmem:[%s53] sm:%s52]
    %s55 = scalar_lea.vmem [#allocation0], 8
    %56 = vst [vmem:[%s55] sm:%s52] %v54
    %v57 = vld [vmem:[#allocation1] sm:%s52]
    %58 = vst [vmem:[#allocation0] sm:%s52] %v57
    %v59 = vld [vmem:[#allocation0] sm:$0xff]
    %60 = vperm.xlu0 %4, %v59
    %v61 = vpop.permute.xlu0 %60
    %62 = vst [vmem:[#allocation2] sm:$0xff] %v61
    %s63 = scalar_lea.vmem [#allocation2], 8
    %s64 = scalar_lea.vmem [#allocation0], 8
    %v65 = vld [vmem:[%s64] sm:$0xff]
    %66 = vperm.xlu0 %4, %v65
    %v67 = vpop.permute.xlu0 %66
    %68 = vst [vmem:[%s63] sm:$0xff] %v67
    %s70 = sshll.u32 1, 4
    %s71 = ssub.s32 %s70, 1
    %v73 = vld [vmem:[#allocation2] sm:%s71]
    %s74 = sshll.u32 1, 4
    %s75 = ssub.s32 %s74, 1
    %76 = vst [vmem:[#allocation3] sm:%s75] %v73
    %s77 = scalar_lea.vmem [#allocation2], 8
    %v78 = vld [vmem:[%s77] sm:%s71]
    %s79 = sshll.u32 1, 4
    %s80 = ssub.s32 %s79, 1
    %s81 = scalar_lea.vmem [#allocation3], 4
    %82 = vst [vmem:[%s81] sm:%s80] %v78
    // Predicated region
    $region39: #{reverse.1} parent=1 // pred_check
      _
    $region40: #{reverse.1} parent=1 // pred_check_branch
      %84 = sbr.rel (0) target = $region42
    $region41: #{reverse.1} parent=1 // pred_region
      // Predicated region
      $region43: #{reverse.1} parent=41 // pred_check
        _
      $region44: #{reverse.1} parent=41 // pred_check_branch
        %86 = sbr.rel target = $region46
      $region45: #{reverse.1} parent=41 // pred_region
        // Predicated region
        $region58: #{reverse.1} parent=45 // pred_check
          _
        $region59: #{reverse.1} parent=45 // pred_check_branch
          %104 = sbr.rel (0) target = $region61
        $region60: #{reverse.1} parent=45 // pred_region
          loop: start=0, step=1, limit=1
          $region62: #{reverse.1} parent=60 // loop_pre_header
            _
          $region63: #{reverse.1} parent=60 // loop_header
            %s106 = sphi 0, %s110
            %p107 = scmp.ge.s32.totalorder %s106, 1
            %s111 = sphi [#allocation3], [#allocation3]
            %s112 = sphi %s1, %s1
          $region64: #{reverse.1} parent=60 // loop_header_branch
            %109 = sbr.rel (%p107) target = $region68
          $region65: #{reverse.1} parent=60 // loop_body
            _
          $region66: #{reverse.1} parent=60 // loop_footer
            %s110 = sadd.s32 1, %s106
          $region67: #{reverse.1} parent=60 // loop_footer_branch
            %105 = sbr.rel target = $region63
          $region68: #{reverse.1} parent=60 // loop_exit
            _
          %s114 = ssub.s32 16, 1
          loop: start=0, step=1, limit=1
          $region69: #{reverse.1} parent=60 // loop_pre_header
            _
          $region70: #{reverse.1} parent=60 // loop_header
            %s116 = sphi 0, %s120
            %p117 = scmp.ge.s32.totalorder %s116, 1
            %s121 = sphi [#allocation3], [#allocation3]
            %s122 = sphi %s1, %s1
          $region71: #{reverse.1} parent=60 // loop_header_branch
            %119 = sbr.rel (%p117) target = $region75
          $region72: #{reverse.1} parent=60 // loop_body
            %v123 = vld [vmem:[%s121] sm:%s114]
            %124 = vst [vmem:[%s122] sm:%s114] %v123
            %v125 = vld [vmem:[%s121 + $0x4] sm:%s114]
            %126 = vst [vmem:[%s122 + $0x4] sm:%s114] %v125
          $region73: #{reverse.1} parent=60 // loop_footer
            %s120 = sadd.s32 1, %s116
          $region74: #{reverse.1} parent=60 // loop_footer_branch
            %115 = sbr.rel target = $region70
          $region75: #{reverse.1} parent=60 // loop_exit
            _
        $region61: #{reverse.1} parent=45 // pred_fallthru
          _
      $region46: #{reverse.1} parent=41 // pred_fallthru
        _
      // Predicated region
      $region47: #{reverse.1} parent=41 // pred_check
        _
      $region48: #{reverse.1} parent=41 // pred_check_branch
        %88 = sbr.rel (0) target = $region50
      $region49: #{reverse.1} parent=41 // pred_region
        %s90 = ssub.s32 16, 1
        loop: start=0, step=1, limit=1
        $region51: #{reverse.1} parent=49 // loop_pre_header
          _
        $region52: #{reverse.1} parent=49 // loop_header
          %s92 = sphi 0, %s96
          %p93 = scmp.ge.s32.totalorder %s92, 1
          %s97 = sphi [#allocation3], [#allocation3]
          %s98 = sphi %s1, %s1
        $region53: #{reverse.1} parent=49 // loop_header_branch
          %95 = sbr.rel (%p93) target = $region57
        $region54: #{reverse.1} parent=49 // loop_body
          %v99 = vld [vmem:[%s97] sm:%s90]
          %100 = vst [vmem:[%s98] sm:%s90] %v99
          %v101 = vld [vmem:[%s97 + $0x4] sm:%s90]
          %102 = vst [vmem:[%s98 + $0x4] sm:%s90] %v101
        $region55: #{reverse.1} parent=49 // loop_footer
          %s96 = sadd.s32 1, %s92
        $region56: #{reverse.1} parent=49 // loop_footer_branch
          %91 = sbr.rel target = $region52
        $region57: #{reverse.1} parent=49 // loop_exit
          _
      $region50: #{reverse.1} parent=41 // pred_fallthru
        _
    $region42: #{reverse.1} parent=1 // pred_fallthru
      _
    %127 = vnop

// kernel: fourier_conv1d.1
$region0: #{fourier_conv1d.1}
  #allocation0 [shape = 'u32[]', space=smem, size = 0x4, offset = 0x4, fixed_abs, tag = 'smem constant byte address 0x4 - core index']
  #allocation1 [shape = 'u32[144,128]{1,0:T(1,128)}', space=vmem, size = 0x12000, scoped, tag = 'internal scratch']
  %s0 = inlined_call_operand.vmem [shape: f32[2,8,128], index: 0, kind: input, shape index: {}]
  %s1 = inlined_call_operand.vmem [shape: f32[2,16,128], index: 1, kind: input, shape index: {}]
  %s2 = inlined_call_operand.vmem [shape: f32[2,4,128], index: 2, kind: input, shape index: {}]
  %s3 = inlined_call_operand.vmem [shape: f32[2,8,128], index: 3, kind: output, shape index: {}]
  %s4 = sld [smem:[#allocation0]]
  $region22: #{fourier_conv1d.1} parent=0
    _
  %s6 = ssub.s32 1, %s4
  %s7 = scalar_select 0, %s6, %s4
  // Predicated region
  $region2: #{fourier_conv1d.1} parent=0 // pred_check
    _
  $region3: #{fourier_conv1d.1} parent=0 // pred_check_branch
    %9 = sbr.rel (0) target = $region5
  $region4: #{fourier_conv1d.1} parent=0 // pred_region
    _
  $region5: #{fourier_conv1d.1} parent=0 // pred_fallthru
    _
  // Predicated region
  $region6: #{fourier_conv1d.1} parent=0 // pred_check
    _
  $region7: #{fourier_conv1d.1} parent=0 // pred_check_branch
    %11 = sbr.rel (0) target = $region9
  $region8: #{fourier_conv1d.1} parent=0 // pred_region
    _
  $region9: #{fourier_conv1d.1} parent=0 // pred_fallthru
    _
  // Predicated region
  $region10: #{fourier_conv1d.1} parent=0 // pred_check
    _
  $region11: #{fourier_conv1d.1} parent=0 // pred_check_branch
    %13 = sbr.rel (0) target = $region13
  $region12: #{fourier_conv1d.1} parent=0 // pred_region
    _
  $region13: #{fourier_conv1d.1} parent=0 // pred_fallthru
    _
  %v14 = vld [vmem:[%s0] sm:$0xff]
  %s15 = scalar_lea.vmem %s0, 8
  %v16 = vld [vmem:[%s15] sm:$0xff]
  %v17 = vld [vmem:[%s1] sm:$0xff]
  %v18 = vld [vmem:[%s1 + $0x8] sm:$0xff]
  %s19 = scalar_lea.vmem %s1, 16
  %v20 = vld [vmem:[%s19] sm:$0xff]
  %v21 = vld [vmem:[%s19 + $0x8] sm:$0xff]
  %v22 = vld [vmem:[%s2] sm:$0xf]
  %s23 = scalar_lea.vmem %s2, 4
  %v24 = vld [vmem:[%s23] sm:$0xf]
  %v25 = vlaneseq
  %v26 = vshrl.u32 %v25, 7
  %v27 = vsub.s32 0, %v26
  %v28 = vrot.slane %v14, %v27
  %v29 = vmul.f32 %v28, %v17
  %v30 = vadd.f32 %v22, %v29
  %v31 = vlaneseq
  %v32 = vshrl.u32 %v31, 7
  %v33 = vsub.s32 0, %v32
  %v34 = vrot.slane %v16, %v33
  %v35 = vmul.f32 %v34, %v20
  %v36 = vsub.f32 %v30, %v35
  %v37 = vmul.f32 %v28, %v20
  %v38 = vadd.f32 %v24, %v37
  %v39 = vmul.f32 %v34, %v17
  %v40 = vadd.f32 %v38, %v39
  %v41 = vlaneseq
  %v42 = vshrl.u32 %v41, 7
  %v43 = vsub.s32 1, %v42
  %v44 = vrot.slane %v14, %v43
  %v45 = vmul.f32 %v44, %v17
  %v47 = vrot.slane %v45, 4
  %v49 = vadd.f32 %v36, %v47
  %v50 = vlaneseq
  %v51 = vshrl.u32 %v50, 7
  %v52 = vsub.s32 1, %v51
  %v53 = vrot.slane %v16, %v52
  %v54 = vmul.f32 %v53, %v20
  %v56 = vrot.slane %v54, 4
  %v58 = vsub.f32 %v49, %v56
  %v59 = vmul.f32 %v44, %v20
  %v61 = vrot.slane %v59, 4
  %v63 = vadd.f32 %v40, %v61
  %v64 = vmul.f32 %v53, %v17
  %v66 = vrot.slane %v64, 4
  %v68 = vadd.f32 %v63, %v66
  %v69 = vlaneseq
  %v70 = vshrl.u32 %v69, 7
  %v71 = vsub.s32 2, %v70
  %v72 = vrot.slane %v14, %v71
  %v73 = vmul.f32 %v72, %v18
  %v74 = vadd.f32 %v58, %v73
  %v75 = vlaneseq
  %v76 = vshrl.u32 %v75, 7
  %v77 = vsub.s32 2, %v76
  %v78 = vrot.slane %v16, %v77
  %v79 = vmul.f32 %v78, %v21
  %v80 = vsub.f32 %v74, %v79
  %v81 = vmul.f32 %v72, %v21
  %v82 = vadd.f32 %v68, %v81
  %v83 = vmul.f32 %v78, %v18
  %v84 = vadd.f32 %v82, %v83
  %v85 = vlaneseq
  %v86 = vshrl.u32 %v85, 7
  %v87 = vsub.s32 3, %v86
  %v88 = vrot.slane %v14, %v87
  %v89 = vmul.f32 %v88, %v18
  %v91 = vrot.slane %v89, 4
  %v93 = vadd.f32 %v80, %v91
  %v94 = vlaneseq
  %v95 = vshrl.u32 %v94, 7
  %v96 = vsub.s32 3, %v95
  %v97 = vrot.slane %v16, %v96
  %v98 = vmul.f32 %v97, %v21
  %v100 = vrot.slane %v98, 4
  %v102 = vsub.f32 %v93, %v100
  %v103 = vmul.f32 %v88, %v21
  %v105 = vrot.slane %v103, 4
  %v107 = vadd.f32 %v84, %v105
  %v108 = vmul.f32 %v97, %v18
  %v110 = vrot.slane %v108, 4
  %v112 = vadd.f32 %v107, %v110
  %113 = vst [vmem:[%s3] sm:$0xf] %v102
  %s114 = scalar_lea.vmem %s3, 8
  %115 = vst [vmem:[%s114] sm:$0xf] %v112
  %v116 = vlaneseq
  %v117 = vshrl.u32 %v116, 7
  %v118 = vsub.s32 4, %v117
  %v119 = vrot.slane %v14, %v118
  %v120 = vmul.f32 %v119, %v17
  %v121 = vadd.f32 %v22, %v120
  %v122 = vlaneseq
  %v123 = vshrl.u32 %v122, 7
  %v124 = vsub.s32 4, %v123
  %v125 = vrot.slane %v16, %v124
  %v126 = vmul.f32 %v125, %v20
  %v127 = vsub.f32 %v121, %v126
  %v128 = vmul.f32 %v119, %v20
  %v129 = vadd.f32 %v24, %v128
  %v130 = vmul.f32 %v125, %v17
  %v131 = vadd.f32 %v129, %v130
  %v132 = vlaneseq
  %v133 = vshrl.u32 %v132, 7
  %v134 = vsub.s32 5, %v133
  %v135 = vrot.slane %v14, %v134
  %v136 = vmul.f32 %v135, %v17
  %v138 = vrot.slane %v136, 4
  %v140 = vadd.f32 %v127, %v138
  %v141 = vlaneseq
  %v142 = vshrl.u32 %v141, 7
  %v143 = vsub.s32 5, %v142
  %v144 = vrot.slane %v16, %v143
  %v145 = vmul.f32 %v144, %v20
  %v147 = vrot.slane %v145, 4
  %v149 = vsub.f32 %v140, %v147
  %v150 = vmul.f32 %v135, %v20
  %v152 = vrot.slane %v150, 4
  %v154 = vadd.f32 %v131, %v152
  %v155 = vmul.f32 %v144, %v17
  %v157 = vrot.slane %v155, 4
  %v159 = vadd.f32 %v154, %v157
  %v160 = vlaneseq
  %v161 = vshrl.u32 %v160, 7
  %v162 = vsub.s32 6, %v161
  %v163 = vrot.slane %v14, %v162
  %v164 = vmul.f32 %v163, %v18
  %v165 = vadd.f32 %v149, %v164
  %v166 = vlaneseq
  %v167 = vshrl.u32 %v166, 7
  %v168 = vsub.s32 6, %v167
  %v169 = vrot.slane %v16, %v168
  %v170 = vmul.f32 %v169, %v21
  %v171 = vsub.f32 %v165, %v170
  %v172 = vmul.f32 %v163, %v21
  %v173 = vadd.f32 %v159, %v172
  %v174 = vmul.f32 %v169, %v18
  %v175 = vadd.f32 %v173, %v174
  %v176 = vlaneseq
  %v177 = vshrl.u32 %v176, 7
  %v178 = vsub.s32 7, %v177
  %v179 = vrot.slane %v14, %v178
  %v180 = vmul.f32 %v179, %v18
  %v182 = vrot.slane %v180, 4
  %v184 = vadd.f32 %v171, %v182
  %v185 = vlaneseq
  %v186 = vshrl.u32 %v185, 7
  %v187 = vsub.s32 7, %v186
  %v188 = vrot.slane %v16, %v187
  %v189 = vmul.f32 %v188, %v21
  %v191 = vrot.slane %v189, 4
  %v193 = vsub.f32 %v184, %v191
  %v194 = vmul.f32 %v179, %v21
  %v196 = vrot.slane %v194, 4
  %v198 = vadd.f32 %v175, %v196
  %v199 = vmul.f32 %v188, %v18
  %v201 = vrot.slane %v199, 4
  %v203 = vadd.f32 %v198, %v201
  %204 = vst [vmem:[%s3 + $0x4] sm:$0xf] %v193
  %205 = vst [vmem:[%s114 + $0x4] sm:$0xf] %v203
  // Predicated region
  $region14: #{fourier_conv1d.1} parent=0 // pred_check
    _
  $region15: #{fourier_conv1d.1} parent=0 // pred_check_branch
    %207 = sbr.rel (0) target = $region17
  $region16: #{fourier_conv1d.1} parent=0 // pred_region
    _
  $region17: #{fourier_conv1d.1} parent=0 // pred_fallthru
    _
  // Predicated region
  $region18: #{fourier_conv1d.1} parent=0 // pred_check
    _
  $region19: #{fourier_conv1d.1} parent=0 // pred_check_branch
    %209 = sbr.rel (0) target = $region21
  $region20: #{fourier_conv1d.1} parent=0 // pred_region
    _
  $region21: #{fourier_conv1d.1} parent=0 // pred_fallthru
    _

</llo_original>
